<compile_context>
chip_gen: v5e
topology: v5e:2x2
jax: 0.10.0
libtpu: 0.0.40
codegen_flags: <defaults>
</compile_context>

<pallas_src>
import math
from functools import partial

import jax
import jax.numpy as jnp
from jax.experimental import pallas as pl
from jax.experimental.pallas import tpu as pltpu


def _focal_loss_kernel(pred_ref, label_ref, out_ref, *, gamma, alpha):
    x = pred_ref[...].astype(jnp.float32)
    y = label_ref[...].astype(jnp.float32)

    # One EUP exp shared by the stable BCE log-term and by sigmoid.
    e = jnp.exp(-jnp.abs(x))          # exp(-|x|)
    inv_1pe = 1.0 / (1.0 + e)         # sigmoid(|x|)

    # binary_cross_entropy_with_logits (reduction='none'), numerically stable:
    #   max(x, 0) - x*y + log(1 + exp(-|x|))
    bce = jnp.maximum(x, 0.0) - x * y + jnp.log1p(e)

    # sigmoid(x) from the same exp:  x>=0 -> 1/(1+e),  x<0 -> e/(1+e)
    p = jnp.where(x >= 0.0, inv_1pe, e * inv_1pe)

    p_t = y * p + (1.0 - y) * (1.0 - p)
    t = 1.0 - p_t

    # (1 - p_t) ** gamma, gamma is a compile-time constant.
    if gamma == 0.0:
        mod = jnp.ones_like(t)
    elif gamma == 1.0:
        mod = t
    elif gamma == 1.5:
        mod = t * jnp.sqrt(t)         # avoids the exp(1.5*log(t)) pow path
    elif gamma == 2.0:
        mod = t * t
    else:
        mod = jnp.power(t, gamma)

    loss = bce * mod
    if alpha > 0:
        loss = loss * (y * alpha + (1.0 - y) * (1.0 - alpha))

    out_ref[...] = loss.astype(out_ref.dtype)


# ~2 MiB of f32 per operand per pipeline buffer:
# 3 operands (2 in + 1 out) x 2 buffers x 2 MiB = 12 MiB, safe on every chip.
_TARGET_TILE_ELEMS = 512 * 1024


def _lane_dense_2d(shape):
    """Pick a lane-dense 2-D view (rows, width) of the flattened array."""
    total = math.prod(shape)
    for width in (1024, 512, 256, 128):
        if total % width == 0:
            return total // width, width
    width = shape[-1]                 # fallback: keep the natural last dim
    return total // width, width


def focal_loss(pred, label, gamma=1.5, alpha=0.25):
    assert pred.shape == label.shape and pred.ndim >= 1
    orig_shape = pred.shape
    total = math.prod(orig_shape)

    rows, width = _lane_dense_2d(orig_shape)
    pred2 = pred.reshape(rows, width)       # contiguous reshape: free
    label2 = label.reshape(rows, width)

    # Row tile: as many rows as fit the per-buffer budget, multiple of 8
    # (or the full row extent when the array is small).
    cap = max(1, _TARGET_TILE_ELEMS // width)
    if rows <= 8 or rows <= cap:
        row_tile = rows
    else:
        row_tile = max(8, (cap // 8) * 8)
    grid = (pl.cdiv(rows, row_tile),)

    out_dtype = pred.dtype
    itemsize = lambda d: jnp.dtype(d).itemsize
    cost = pl.CostEstimate(
        flops=16 * total,
        transcendentals=4 * total,
        bytes_accessed=total * (itemsize(pred.dtype)
                                + itemsize(label.dtype)
                                + itemsize(out_dtype)),
    )

    kernel = partial(_focal_loss_kernel, gamma=float(gamma), alpha=float(alpha))

    out2 = pl.pallas_call(
        kernel,
        out_shape=jax.ShapeDtypeStruct((rows, width), out_dtype),
        grid=grid,
        in_specs=[
            pl.BlockSpec((row_tile, width), lambda i: (i, 0)),
            pl.BlockSpec((row_tile, width), lambda i: (i, 0)),
        ],
        out_specs=pl.BlockSpec((row_tile, width), lambda i: (i, 0)),
        compiler_params=pltpu.CompilerParams(
            dimension_semantics=("parallel",),
            vmem_limit_bytes=32 * 1024 * 1024,
        ),
        cost_estimate=cost,
    )(pred2, label2)

    return out2.reshape(orig_shape)


def focal_loss_reference(pred, label, gamma=1.5, alpha=0.25):
    """Pure-JAX reference matching the PyTorch module (elementwise loss)."""
    x = pred.astype(jnp.float32)
    y = label.astype(jnp.float32)
    bce = jnp.maximum(x, 0.0) - x * y + jnp.log1p(jnp.exp(-jnp.abs(x)))
    p = jax.nn.sigmoid(x)
    p_t = y * p + (1.0 - y) * (1.0 - p)
    loss = bce * jnp.power(1.0 - p_t, gamma)
    if alpha > 0:
        loss = loss * (y * alpha + (1.0 - y) * (1.0 - alpha))
    return loss.astype(pred.dtype)


if __name__ == "__main__":
    key = jax.random.PRNGKey(0)
    k1, k2 = jax.random.split(key)

    # (rows, classes) -- small shape consistent with a per-anchor class head.
    N, C = 16, 32
    pred = jax.random.normal(k1, (N, C), dtype=jnp.float32) * 2.0
    label = (jax.random.uniform(k2, (N, C)) > 0.8).astype(jnp.float32)

    out = focal_loss(pred, label, gamma=1.5, alpha=0.25)
    out = jax.block_until_ready(out)

    ref = focal_loss_reference(pred, label, gamma=1.5, alpha=0.25)
    assert out.shape == ref.shape, (out.shape, ref.shape)
    assert jnp.allclose(out, ref, rtol=1e-5, atol=1e-5), (
        float(jnp.max(jnp.abs(out - ref))))

    print("KERNEL_OK")
</pallas_src>

<mosaic_0001>
module attributes {stable_mosaic.version = 11 : i64} {
  func.func @_focal_loss_kernel(%arg0: i32, %arg1: memref<1x512xf32, #tpu.memory_space<vmem>>, %arg2: memref<1x512xf32, #tpu.memory_space<vmem>>, %arg3: memref<1x512xf32, #tpu.memory_space<vmem>>) attributes {dimension_semantics = [#tpu.dimension_semantics<parallel>], iteration_bounds = array<i64: 1>, scalar_prefetch = 0 : i64, scratch_operands = 0 : i64, tpu.core_type = #tpu.core_type<tc>, window_params = [{transform_indices = @transform_0, window_bounds = array<i64: 1, 512>}, {transform_indices = @transform_1, window_bounds = array<i64: 1, 512>}, {transform_indices = @transform_2, window_bounds = array<i64: 1, 512>}]} {
    %c0 = arith.constant 0 : index
    %c0_0 = arith.constant 0 : index
    %0 = vector.load %arg1[%c0, %c0_0] : memref<1x512xf32, #tpu.memory_space<vmem>>, vector<1x512xf32>
    %c0_1 = arith.constant 0 : index
    %c0_2 = arith.constant 0 : index
    %1 = vector.load %arg2[%c0_1, %c0_2] : memref<1x512xf32, #tpu.memory_space<vmem>>, vector<1x512xf32>
    %2 = math.absf %0 : vector<1x512xf32>
    %cst = arith.constant 0.000000e+00 : f32
    %3 = vector.broadcast %cst : f32 to vector<1x512xf32>
    %4 = arith.subf %3, %2 : vector<1x512xf32>
    %5 = math.exp %4 : vector<1x512xf32>
    %cst_3 = arith.constant 1.000000e+00 : f32
    %6 = vector.broadcast %cst_3 : f32 to vector<1x512xf32>
    %7 = arith.addf %6, %5 : vector<1x512xf32>
    %cst_4 = arith.constant 1.000000e+00 : f32
    %8 = vector.broadcast %cst_4 : f32 to vector<1x512xf32>
    %9 = arith.divf %8, %7 : vector<1x512xf32>
    %cst_5 = arith.constant 0.000000e+00 : f32
    %10 = vector.broadcast %cst_5 : f32 to vector<1x512xf32>
    %11 = arith.maximumf %0, %10 : vector<1x512xf32>
    %12 = arith.mulf %0, %1 : vector<1x512xf32>
    %13 = arith.subf %11, %12 : vector<1x512xf32>
    %14 = math.log1p %5 : vector<1x512xf32>
    %15 = arith.addf %13, %14 : vector<1x512xf32>
    %cst_6 = arith.constant 0.000000e+00 : f32
    %16 = vector.broadcast %cst_6 : f32 to vector<1x512xf32>
    %17 = arith.cmpf oge, %0, %16 : vector<1x512xf32>
    %18 = arith.mulf %5, %9 : vector<1x512xf32>
    %19 = arith.select %17, %9, %18 : vector<1x512xi1>, vector<1x512xf32>
    %20 = arith.mulf %1, %19 : vector<1x512xf32>
    %cst_7 = arith.constant 1.000000e+00 : f32
    %21 = vector.broadcast %cst_7 : f32 to vector<1x512xf32>
    %22 = arith.subf %21, %1 : vector<1x512xf32>
    %cst_8 = arith.constant 1.000000e+00 : f32
    %23 = vector.broadcast %cst_8 : f32 to vector<1x512xf32>
    %24 = arith.subf %23, %19 : vector<1x512xf32>
    %25 = arith.mulf %22, %24 : vector<1x512xf32>
    %26 = arith.addf %20, %25 : vector<1x512xf32>
    %cst_9 = arith.constant 1.000000e+00 : f32
    %27 = vector.broadcast %cst_9 : f32 to vector<1x512xf32>
    %28 = arith.subf %27, %26 : vector<1x512xf32>
    %29 = math.sqrt %28 : vector<1x512xf32>
    %30 = arith.mulf %28, %29 : vector<1x512xf32>
    %31 = arith.mulf %15, %30 : vector<1x512xf32>
    %cst_10 = arith.constant 2.500000e-01 : f32
    %32 = vector.broadcast %cst_10 : f32 to vector<1x512xf32>
    %33 = arith.mulf %1, %32 : vector<1x512xf32>
    %cst_11 = arith.constant 1.000000e+00 : f32
    %34 = vector.broadcast %cst_11 : f32 to vector<1x512xf32>
    %35 = arith.subf %34, %1 : vector<1x512xf32>
    %cst_12 = arith.constant 7.500000e-01 : f32
    %36 = vector.broadcast %cst_12 : f32 to vector<1x512xf32>
    %37 = arith.mulf %35, %36 : vector<1x512xf32>
    %38 = arith.addf %33, %37 : vector<1x512xf32>
    %39 = arith.mulf %31, %38 : vector<1x512xf32>
    %c0_13 = arith.constant 0 : index
    %c0_14 = arith.constant 0 : index
    %40 = vector.load %arg3[%c0_13, %c0_14] : memref<1x512xf32, #tpu.memory_space<vmem>>, vector<1x512xf32>
    tpu.vector_store %arg3[%c0_13, %c0_14], %39 {strides = array<i32>} : memref<1x512xf32, #tpu.memory_space<vmem>>, vector<1x512xf32>,
    return
  }
  func.func @transform_0(%arg0: i32) -> (i32, i32) {
    %c0_i32 = arith.constant 0 : i32
    %c0_i32_0 = arith.constant 0 : i32
    return %arg0, %c0_i32 : i32, i32
  }
  func.func @transform_1(%arg0: i32) -> (i32, i32) {
    %c0_i32 = arith.constant 0 : i32
    %c0_i32_0 = arith.constant 0 : i32
    return %arg0, %c0_i32 : i32, i32
  }
  func.func @transform_2(%arg0: i32) -> (i32, i32) {
    %c0_i32 = arith.constant 0 : i32
    %c0_i32_0 = arith.constant 0 : i32
    return %arg0, %c0_i32 : i32, i32
  }
}

</mosaic_0001>

<llo_original>
// kernel: tpu_custom_call.1
$region0: #{tpu_custom_call.1}
  #allocation0 [shape = 'u32[]', space=smem, size = 0x4, offset = 0x4, fixed_abs, tag = 'smem constant byte address 0x4 - core index']
  #allocation1 [shape = 'u32[72,128]{1,0:T(1,128)}', space=vmem, size = 0x9000, scoped, tag = 'internal scratch']
  %s0 = inlined_call_operand.hbm [shape: f32[1,512], index: 0, kind: input, shape index: {}]
  %s1 = inlined_call_operand.hbm [shape: f32[1,512], index: 1, kind: input, shape index: {}]
  %s2 = inlined_call_operand.hbm [shape: f32[1,512], index: 2, kind: output, shape index: {}]
  %s3 = sld [smem:[#allocation0]]
  $region26: #{tpu_custom_call.1} parent=0
    _
  %s5 = ssub.s32 1, %s3
  %s6 = scalar_select 0, %s5, %s3
  $region1: #{tpu_custom_call.1} parent=0
    #allocation2 [shape = 'u8[2048]{0}', space=vmem, size = 0x800, scoped, tag = 'input window, operand 0, single buffered']
    #allocation3 [shape = 's32[1]{0}', space=sflag, size = 0x4, scoped, tag = 'scoped memory for tpu_custom_call.1']
    #allocation4 [shape = 's32[1]{0}', space=sflag, size = 0x4, scoped, tag = 'scoped memory for tpu_custom_call.1']
    #allocation5 [shape = 'u8[2048]{0}', space=vmem, size = 0x800, scoped, tag = 'input window, operand 1, single buffered']
    #allocation6 [shape = 's32[1]{0}', space=sflag, size = 0x4, scoped, tag = 'scoped memory for tpu_custom_call.1']
    #allocation7 [shape = 'u8[2048]{0}', space=vmem, size = 0x800, scoped, tag = 'output window, operand 0, single buffered']
    %7 = vsyncpa [#allocation3], 0
    %8 = vsyncpa [#allocation6], 0
    %9 = vsyncpa [#allocation4], 0
    // Predicated region
    $region2: #{tpu_custom_call.1} parent=1 // pred_check
      _
    $region3: #{tpu_custom_call.1} parent=1 // pred_check_branch
      %11 = sbr.rel (0) target = $region5
    $region4: #{tpu_custom_call.1} parent=1 // pred_region
      %13 = vsyncadd [#allocation3], 0
      %s15 = sshll.u32 %s0, 4
      %s16 = int_to_ptr.hbm [resolvable:$true] %s15
      %s17 = sshll.u32 [#allocation2], 4
      %s18 = int_to_ptr.vmem [resolvable:$true] %s17
      %20 = dma.hbm_to_vmem [thread:$0]  %s16, 64, %s18, [#allocation3]
    $region5: #{tpu_custom_call.1} parent=1 // pred_fallthru
      _
    // Predicated region
    $region6: #{tpu_custom_call.1} parent=1 // pred_check
      _
    $region7: #{tpu_custom_call.1} parent=1 // pred_check_branch
      %22 = sbr.rel (0) target = $region9
    $region8: #{tpu_custom_call.1} parent=1 // pred_region
      %24 = vsyncadd [#allocation6], 0
      %s26 = sshll.u32 %s1, 4
      %s27 = int_to_ptr.hbm [resolvable:$true] %s26
      %s28 = sshll.u32 [#allocation5], 4
      %s29 = int_to_ptr.vmem [resolvable:$true] %s28
      %31 = dma.hbm_to_vmem [thread:$0]  %s27, 64, %s29, [#allocation6]
    $region9: #{tpu_custom_call.1} parent=1 // pred_fallthru
      _
    // Predicated region
    $region10: #{tpu_custom_call.1} parent=1 // pred_check
      _
    $region11: #{tpu_custom_call.1} parent=1 // pred_check_branch
      %33 = sbr.rel (0) target = $region13
    $region12: #{tpu_custom_call.1} parent=1 // pred_region
      %35 = dma.done [#allocation3], 64
    $region13: #{tpu_custom_call.1} parent=1 // pred_fallthru
      _
    // Predicated region
    $region14: #{tpu_custom_call.1} parent=1 // pred_check
      _
    $region15: #{tpu_custom_call.1} parent=1 // pred_check_branch
      %37 = sbr.rel (0) target = $region17
    $region16: #{tpu_custom_call.1} parent=1 // pred_region
      %39 = dma.done [#allocation6], 64
    $region17: #{tpu_custom_call.1} parent=1 // pred_fallthru
      _
    %v40 = vld [vmem:[#allocation2] sm:$0xf]
    %v41 = vld [vmem:[#allocation5] sm:$0xf]
    %v42 = vand.u32 2147483647, %v40
    %v43 = vsub.f32 0.0, %v42
    %v44 = vmul.f32 %v43, 1.442695
    %v45 = vpow.pop %v44
    %v46 = vadd.f32 %v45, 1.0
    %v47 = vrcp.pop %v46
    %v48 = vmul.f32 %v46, %v47
    %v49 = vsub.f32 1.0, %v48
    %v50 = vmul.f32 %v47, %v49
    %v51 = vadd.f32 %v47, %v50
    %vm52 = vweird.f32 %v46
    %vm53 = vweird.f32 %v47
    %vm54 = vmor %vm52, %vm53
    %v55 = vsel %vm54, %v47, %v51
    %v56 = vand.u32 2147483647, %v46
    %vm57 = vcmp.eq.f32.partialorder %v56, 8.507059e+37
    %v58 = vand.u32 %v46, 2147483648
    %v59 = vor.u32 1.1754944e-38, %v58
    %v60 = vsel %vm57, %v59, %v55
    %v61 = vmul.f32 1.0, %v60
    %v62 = vmax.f32 %v40, 0.0
    %v63 = vmul.f32 %v40, %v41
    %v64 = vsub.f32 %v62, %v63
    %v65 = vadd.f32 %v45, 1.0
    %v66 = vlog2.pop %v65
    %v67 = vmul.f32 %v66, 0.6931472
    %v68 = vmul.f32 -0.5, %v45
    %v69 = vadd.f32 %v68, 1.0
    %v70 = vmul.f32 %v69, %v45
    %v71 = vand.u32 2147483647, %v45
    %vm72 = vcmp.lt.f32.partialorder %v71, 0.0004427343
    %v73 = vsel %vm72, %v70, %v67
    %v74 = vadd.f32 %v64, %v73
    %vm75 = vcmp.ge.f32.partialorder %v40, 0.0
    %v76 = vmul.f32 %v45, %v61
    %v77 = vsel %vm75, %v61, %v76
    %v78 = vmul.f32 %v41, %v77
    %v79 = vsub.f32 1.0, %v41
    %v80 = vsub.f32 1.0, %v77
    %v81 = vmul.f32 %v79, %v80
    %v82 = vadd.f32 %v78, %v81
    %v83 = vsub.f32 1.0, %v82
    %v84 = vrsqrt.pop %v83
    %v85 = vmul.f32 %v84, %v83
    %v86 = vmul.f32 %v85, %v84
    %v87 = vmul.f32 0.5, %v86
    %v88 = vsub.f32 1.5, %v87
    %v89 = vmul.f32 %v84, %v88
    %v90 = vmul.f32 %v83, %v89
    %vm91 = vcmp.eq.f32.partialorder %v83, inf
    %v92 = vsel %vm91, %v83, %v90
    %vm93 = vcmp.eq.f32.partialorder %v83, 0.0
    %v94 = vand.u32 %v83, 2147483648
    %v95 = vsel %vm93, %v94, %v92
    %v96 = vmul.f32 %v83, %v95
    %v97 = vmul.f32 %v74, %v96
    %v98 = vmul.f32 %v41, 0.25
    %v99 = vmul.f32 %v79, 0.75
    %v100 = vadd.f32 %v98, %v99
    %v101 = vmul.f32 %v97, %v100
    %v102 = vlaneseq
    %vm103 = vcmp.ge.s32.totalorder %v102, 0
    %vm104 = vcmp.lt.s32.totalorder %v102, 512
    %vm105 = vmand %vm103, %vm104
    %106 = vst.msk [vmem:[#allocation7] sm:$0xf] %vm105, %v101
    // Predicated region
    $region18: #{tpu_custom_call.1} parent=1 // pred_check
      _
    $region19: #{tpu_custom_call.1} parent=1 // pred_check_branch
      %108 = sbr.rel (0) target = $region21
    $region20: #{tpu_custom_call.1} parent=1 // pred_region
      %110 = vsyncadd [#allocation4], 0
      %s112 = sshll.u32 [#allocation7], 4
      %s113 = int_to_ptr.vmem [resolvable:$true] %s112
      %s114 = sshll.u32 %s2, 4
      %s115 = int_to_ptr.hbm [resolvable:$true] %s114
      %117 = dma.vmem_to_hbm [thread:$0]  %s113, 64, %s115, [#allocation4]
    $region21: #{tpu_custom_call.1} parent=1 // pred_fallthru
      _
    // Predicated region
    $region22: #{tpu_custom_call.1} parent=1 // pred_check
      _
    $region23: #{tpu_custom_call.1} parent=1 // pred_check_branch
      %119 = sbr.rel (0) target = $region25
    $region24: #{tpu_custom_call.1} parent=1 // pred_region
      %121 = dma.done [#allocation4], 64
    $region25: #{tpu_custom_call.1} parent=1 // pred_fallthru
      _
    %122 = vsyncpa [#allocation3], 1
    %123 = vsyncpa [#allocation6], 1
    %124 = vsyncpa [#allocation4], 1

</llo_original>
